<compile_context>
chip_gen: v5e
topology: v5e:2x2
jax: 0.10.0
libtpu: 0.0.40
codegen_flags: <defaults>
</compile_context>

<pallas_src>
from functools import partial

import jax
import jax.numpy as jnp
from jax.experimental import pallas as pl
from jax.experimental.pallas import tpu as pltpu

_LANE = 128


def _so3_exp_compose_kernel(phi_ref, xq_ref, out_ref):
    """Exp map so3 -> SO3 (quaternion), then Hamilton product q_w ⊗ q_x.

    phi_ref: (3, RT, 128) tangent component planes (x, y, z).
    xq_ref : (4, RT, 128) input quaternion component planes (x, y, z, w).
    out_ref: (4, RT, 128) output quaternion component planes (x, y, z, w).
    """
    phi = phi_ref[...]          # (3, RT, 128) float32
    xq = xq_ref[...]            # (4, RT, 128) float32

    px = phi[0]                 # (RT, 128) -- full vregs
    py = phi[1]
    pz = phi[2]

    # --- Exp map: phi -> q = (phi * sin(|phi|/2)/|phi|, cos(|phi|/2)) ---
    theta2 = px * px + py * py + pz * pz                  # (RT, 128)
    eps2 = jnp.float32(1e-12)                             # (1e-6)^2
    small = theta2 < eps2
    inv_theta = jax.lax.rsqrt(jnp.maximum(theta2, eps2))  # EUP
    half = jnp.float32(0.5) * theta2 * inv_theta          # 0.5 * |phi|
    # Taylor fallbacks for tiny angles (match pypose's small-angle branch).
    imag_coef = jnp.where(small,
                          jnp.float32(0.5) - theta2 / jnp.float32(48.0),
                          jnp.sin(half) * inv_theta)
    w1 = jnp.where(small,
                   jnp.float32(1.0) - theta2 / jnp.float32(8.0),
                   jnp.cos(half))

    x1 = px * imag_coef
    y1 = py * imag_coef
    z1 = pz * imag_coef

    x2 = xq[0]
    y2 = xq[1]
    z2 = xq[2]
    w2 = xq[3]

    # --- Hamilton product q_weight ⊗ q_x, stored as (x, y, z, w) planes ---
    out_ref[0] = w1 * x2 + x1 * w2 + y1 * z2 - z1 * y2
    out_ref[1] = w1 * y2 - x1 * z2 + y1 * w2 + z1 * x2
    out_ref[2] = w1 * z2 + x1 * y2 - y1 * x2 + z1 * w2
    out_ref[3] = w1 * w2 - x1 * x2 - y1 * y2 - z1 * z2


@partial(jax.jit, static_argnames=("r_tile",))
def testnet_forward(weight_phi, x_quat, *, r_tile=512):
    """weight_phi: (n, 3) so3 params; x_quat: (n, 4) SO3 input; returns (n, 4).

    r_tile: rows of 128 lanes per grid step (multiple of 8 when tiling).
    Default 512 rows (64K elems) -> ~5.5 MiB double-buffered: safe on every
    generation's default scoped-VMEM limit.
    """
    n = weight_phi.shape[0]

    # Row count of 128-lane rows, padded so the tile divides it evenly.
    r_full = pl.cdiv(n, _LANE)
    if r_full <= r_tile:
        rt = r_full                      # single grid step, full-extent block
        r_pad = rt
    else:
        rt = r_tile                      # multiple of 8 -> (8,128)-legal tile
        r_pad = pl.cdiv(r_full, rt) * rt
    n_pad = r_pad * _LANE
    pad = n_pad - n

    phi = weight_phi.astype(jnp.float32)
    xq = x_quat.astype(jnp.float32)
    if pad:
        # Zero tangent -> identity-quaternion branch; tail rows sliced off.
        phi = jnp.pad(phi, ((0, pad), (0, 0)))
        xq = jnp.pad(xq, ((0, pad), (0, 0)))

    # (n_pad, C) -> (C, r_pad, 128): component planes, batch fills full vregs.
    # Pad + reshape + transpose fuse into one pass under jit.
    phi_p = jnp.transpose(phi.reshape(r_pad, _LANE, 3), (2, 0, 1))
    xq_p = jnp.transpose(xq.reshape(r_pad, _LANE, 4), (2, 0, 1))

    grid = (r_pad // rt,)

    out_p = pl.pallas_call(
        _so3_exp_compose_kernel,
        out_shape=jax.ShapeDtypeStruct((4, r_pad, _LANE), jnp.float32),
        grid=grid,
        in_specs=[
            pl.BlockSpec((3, rt, _LANE), lambda i: (0, i, 0)),
            pl.BlockSpec((4, rt, _LANE), lambda i: (0, i, 0)),
        ],
        out_specs=pl.BlockSpec((4, rt, _LANE), lambda i: (0, i, 0)),
        compiler_params=pltpu.CompilerParams(
            dimension_semantics=("parallel",)),
    )(phi_p, xq_p)

    # (4, r_pad, 128) -> (4, n_pad) -> slice before the final transpose.
    return out_p.reshape(4, n_pad)[:, :n].T


# ---------------- pure-JAX reference (for correctness check) ----------------
def _so3_exp_ref(phi):
    theta = jnp.linalg.norm(phi, axis=-1, keepdims=True)
    theta2 = theta * theta
    half = 0.5 * theta
    small = theta < 1e-6
    safe = jnp.where(small, 1.0, theta)
    imag_coef = jnp.where(small, 0.5 - theta2 / 48.0, jnp.sin(half) / safe)
    w = jnp.where(small, 1.0 - theta2 / 8.0, jnp.cos(half))
    return jnp.concatenate([phi * imag_coef, w], axis=-1)


def _quat_mul_ref(q1, q2):
    x1, y1, z1, w1 = [q1[:, i:i + 1] for i in range(4)]
    x2, y2, z2, w2 = [q2[:, i:i + 1] for i in range(4)]
    ox = w1 * x2 + x1 * w2 + y1 * z2 - z1 * y2
    oy = w1 * y2 - x1 * z2 + y1 * w2 + z1 * x2
    oz = w1 * z2 + x1 * y2 - y1 * x2 + z1 * w2
    ow = w1 * w2 - x1 * x2 - y1 * y2 - z1 * z2
    return jnp.concatenate([ox, oy, oz, ow], axis=-1)


if __name__ == "__main__":
    key = jax.random.PRNGKey(0)

    ok = True
    # Small shapes: n=8 (single row, lane-padded) and n=300 (multi-row).
    for n in (8, 300):
        k_w, k_x, key = jax.random.split(key, 3)

        # "pp.Parameter(pp.randn_so3(n))": n random so3 tangent vectors.
        weight_phi = jax.random.normal(k_w, (n, 3), dtype=jnp.float32)

        # "pp.randn_SO3-like" input: exponentiate small random so3 tangents.
        x_phi = 0.1 * jax.random.normal(k_x, (n, 3), dtype=jnp.float32)
        x_quat = _so3_exp_ref(x_phi)                     # (n, 4), (x, y, z, w)

        out = testnet_forward(weight_phi, x_quat)
        out = jax.block_until_ready(out)

        ref = _quat_mul_ref(_so3_exp_ref(weight_phi), x_quat)
        ok &= out.shape == (n, 4)
        ok &= bool(jnp.allclose(out, ref, atol=1e-5, rtol=1e-5))

    assert ok
    print("KERNEL_OK")
</pallas_src>

<mosaic_0001>
module attributes {stable_mosaic.version = 11 : i64} {
  func.func @_so3_exp_compose_kernel(%arg0: i32, %arg1: memref<3x1x128xf32, #tpu.memory_space<vmem>>, %arg2: memref<4x1x128xf32, #tpu.memory_space<vmem>>, %arg3: memref<4x1x128xf32, #tpu.memory_space<vmem>>) attributes {dimension_semantics = [#tpu.dimension_semantics<parallel>], iteration_bounds = array<i64: 1>, scalar_prefetch = 0 : i64, scratch_operands = 0 : i64, tpu.core_type = #tpu.core_type<tc>, window_params = [{transform_indices = @transform_0, window_bounds = array<i64: 3, 1, 128>}, {transform_indices = @transform_1, window_bounds = array<i64: 4, 1, 128>}, {transform_indices = @transform_2, window_bounds = array<i64: 4, 1, 128>}]} {
    %c0 = arith.constant 0 : index
    %c0_0 = arith.constant 0 : index
    %c0_1 = arith.constant 0 : index
    %0 = vector.load %arg1[%c0, %c0_0, %c0_1] : memref<3x1x128xf32, #tpu.memory_space<vmem>>, vector<3x1x128xf32>
    %c0_2 = arith.constant 0 : index
    %c0_3 = arith.constant 0 : index
    %c0_4 = arith.constant 0 : index
    %1 = vector.load %arg2[%c0_2, %c0_3, %c0_4] : memref<4x1x128xf32, #tpu.memory_space<vmem>>, vector<4x1x128xf32>
    %2 = vector.extract_strided_slice %0 {offsets = [0, 0, 0], sizes = [1, 1, 128], strides = [1, 1, 1]} : vector<3x1x128xf32> to vector<1x1x128xf32>
    %3 = vector.shape_cast %2 : vector<1x1x128xf32> to vector<1x128xf32>
    %4 = vector.extract_strided_slice %0 {offsets = [1, 0, 0], sizes = [1, 1, 128], strides = [1, 1, 1]} : vector<3x1x128xf32> to vector<1x1x128xf32>
    %5 = vector.shape_cast %4 : vector<1x1x128xf32> to vector<1x128xf32>
    %6 = vector.extract_strided_slice %0 {offsets = [2, 0, 0], sizes = [1, 1, 128], strides = [1, 1, 1]} : vector<3x1x128xf32> to vector<1x1x128xf32>
    %7 = vector.shape_cast %6 : vector<1x1x128xf32> to vector<1x128xf32>
    %8 = arith.mulf %3, %3 : vector<1x128xf32>
    %9 = arith.mulf %5, %5 : vector<1x128xf32>
    %10 = arith.addf %8, %9 : vector<1x128xf32>
    %11 = arith.mulf %7, %7 : vector<1x128xf32>
    %12 = arith.addf %10, %11 : vector<1x128xf32>
    %cst = arith.constant 9.99999996E-13 : f32
    %13 = vector.broadcast %cst : f32 to vector<1x128xf32>
    %14 = arith.cmpf olt, %12, %13 : vector<1x128xf32>
    %cst_5 = arith.constant 9.99999996E-13 : f32
    %15 = vector.broadcast %cst_5 : f32 to vector<1x128xf32>
    %16 = arith.maximumf %12, %15 : vector<1x128xf32>
    %17 = math.rsqrt %16 : vector<1x128xf32>
    %cst_6 = arith.constant 5.000000e-01 : f32
    %18 = vector.broadcast %cst_6 : f32 to vector<1x128xf32>
    %19 = arith.mulf %18, %12 : vector<1x128xf32>
    %20 = arith.mulf %19, %17 : vector<1x128xf32>
    %cst_7 = arith.constant 4.800000e+01 : f32
    %21 = vector.broadcast %cst_7 : f32 to vector<1x128xf32>
    %22 = arith.divf %12, %21 : vector<1x128xf32>
    %cst_8 = arith.constant 5.000000e-01 : f32
    %23 = vector.broadcast %cst_8 : f32 to vector<1x128xf32>
    %24 = arith.subf %23, %22 : vector<1x128xf32>
    %25 = math.sin %20 : vector<1x128xf32>
    %26 = arith.mulf %25, %17 : vector<1x128xf32>
    %27 = arith.select %14, %24, %26 : vector<1x128xi1>, vector<1x128xf32>
    %cst_9 = arith.constant 8.000000e+00 : f32
    %28 = vector.broadcast %cst_9 : f32 to vector<1x128xf32>
    %29 = arith.divf %12, %28 : vector<1x128xf32>
    %cst_10 = arith.constant 1.000000e+00 : f32
    %30 = vector.broadcast %cst_10 : f32 to vector<1x128xf32>
    %31 = arith.subf %30, %29 : vector<1x128xf32>
    %32 = math.cos %20 : vector<1x128xf32>
    %33 = arith.select %14, %31, %32 : vector<1x128xi1>, vector<1x128xf32>
    %34 = arith.mulf %3, %27 : vector<1x128xf32>
    %35 = arith.mulf %5, %27 : vector<1x128xf32>
    %36 = arith.mulf %7, %27 : vector<1x128xf32>
    %37 = vector.extract_strided_slice %1 {offsets = [0, 0, 0], sizes = [1, 1, 128], strides = [1, 1, 1]} : vector<4x1x128xf32> to vector<1x1x128xf32>
    %38 = vector.shape_cast %37 : vector<1x1x128xf32> to vector<1x128xf32>
    %39 = vector.extract_strided_slice %1 {offsets = [1, 0, 0], sizes = [1, 1, 128], strides = [1, 1, 1]} : vector<4x1x128xf32> to vector<1x1x128xf32>
    %40 = vector.shape_cast %39 : vector<1x1x128xf32> to vector<1x128xf32>
    %41 = vector.extract_strided_slice %1 {offsets = [2, 0, 0], sizes = [1, 1, 128], strides = [1, 1, 1]} : vector<4x1x128xf32> to vector<1x1x128xf32>
    %42 = vector.shape_cast %41 : vector<1x1x128xf32> to vector<1x128xf32>
    %43 = vector.extract_strided_slice %1 {offsets = [3, 0, 0], sizes = [1, 1, 128], strides = [1, 1, 1]} : vector<4x1x128xf32> to vector<1x1x128xf32>
    %44 = vector.shape_cast %43 : vector<1x1x128xf32> to vector<1x128xf32>
    %45 = arith.mulf %33, %38 : vector<1x128xf32>
    %46 = arith.mulf %34, %44 : vector<1x128xf32>
    %47 = arith.addf %45, %46 : vector<1x128xf32>
    %48 = arith.mulf %35, %42 : vector<1x128xf32>
    %49 = arith.addf %47, %48 : vector<1x128xf32>
    %50 = arith.mulf %36, %40 : vector<1x128xf32>
    %51 = arith.subf %49, %50 : vector<1x128xf32>
    %c0_11 = arith.constant 0 : index
    %c0_12 = arith.constant 0 : index
    %c0_13 = arith.constant 0 : index
    %52 = vector.load %arg3[%c0_11, %c0_12, %c0_13] : memref<4x1x128xf32, #tpu.memory_space<vmem>>, vector<1x1x128xf32>
    %53 = vector.shape_cast %52 : vector<1x1x128xf32> to vector<1x128xf32>
    %54 = vector.shape_cast %51 : vector<1x128xf32> to vector<1x1x128xf32>
    tpu.vector_store %arg3[%c0_11, %c0_12, %c0_13], %54 {strides = array<i32>} : memref<4x1x128xf32, #tpu.memory_space<vmem>>, vector<1x1x128xf32>,
    %55 = arith.mulf %33, %40 : vector<1x128xf32>
    %56 = arith.mulf %34, %42 : vector<1x128xf32>
    %57 = arith.subf %55, %56 : vector<1x128xf32>
    %58 = arith.mulf %35, %44 : vector<1x128xf32>
    %59 = arith.addf %57, %58 : vector<1x128xf32>
    %60 = arith.mulf %36, %38 : vector<1x128xf32>
    %61 = arith.addf %59, %60 : vector<1x128xf32>
    %c1 = arith.constant 1 : index
    %c0_14 = arith.constant 0 : index
    %c0_15 = arith.constant 0 : index
    %62 = vector.load %arg3[%c1, %c0_14, %c0_15] : memref<4x1x128xf32, #tpu.memory_space<vmem>>, vector<1x1x128xf32>
    %63 = vector.shape_cast %62 : vector<1x1x128xf32> to vector<1x128xf32>
    %64 = vector.shape_cast %61 : vector<1x128xf32> to vector<1x1x128xf32>
    tpu.vector_store %arg3[%c1, %c0_14, %c0_15], %64 {strides = array<i32>} : memref<4x1x128xf32, #tpu.memory_space<vmem>>, vector<1x1x128xf32>,
    %65 = arith.mulf %33, %42 : vector<1x128xf32>
    %66 = arith.mulf %34, %40 : vector<1x128xf32>
    %67 = arith.addf %65, %66 : vector<1x128xf32>
    %68 = arith.mulf %35, %38 : vector<1x128xf32>
    %69 = arith.subf %67, %68 : vector<1x128xf32>
    %70 = arith.mulf %36, %44 : vector<1x128xf32>
    %71 = arith.addf %69, %70 : vector<1x128xf32>
    %c2 = arith.constant 2 : index
    %c0_16 = arith.constant 0 : index
    %c0_17 = arith.constant 0 : index
    %72 = vector.load %arg3[%c2, %c0_16, %c0_17] : memref<4x1x128xf32, #tpu.memory_space<vmem>>, vector<1x1x128xf32>
    %73 = vector.shape_cast %72 : vector<1x1x128xf32> to vector<1x128xf32>
    %74 = vector.shape_cast %71 : vector<1x128xf32> to vector<1x1x128xf32>
    tpu.vector_store %arg3[%c2, %c0_16, %c0_17], %74 {strides = array<i32>} : memref<4x1x128xf32, #tpu.memory_space<vmem>>, vector<1x1x128xf32>,
    %75 = arith.mulf %33, %44 : vector<1x128xf32>
    %76 = arith.mulf %34, %38 : vector<1x128xf32>
    %77 = arith.subf %75, %76 : vector<1x128xf32>
    %78 = arith.mulf %35, %40 : vector<1x128xf32>
    %79 = arith.subf %77, %78 : vector<1x128xf32>
    %80 = arith.mulf %36, %42 : vector<1x128xf32>
    %81 = arith.subf %79, %80 : vector<1x128xf32>
    %c3 = arith.constant 3 : index
    %c0_18 = arith.constant 0 : index
    %c0_19 = arith.constant 0 : index
    %82 = vector.load %arg3[%c3, %c0_18, %c0_19] : memref<4x1x128xf32, #tpu.memory_space<vmem>>, vector<1x1x128xf32>
    %83 = vector.shape_cast %82 : vector<1x1x128xf32> to vector<1x128xf32>
    %84 = vector.shape_cast %81 : vector<1x128xf32> to vector<1x1x128xf32>
    tpu.vector_store %arg3[%c3, %c0_18, %c0_19], %84 {strides = array<i32>} : memref<4x1x128xf32, #tpu.memory_space<vmem>>, vector<1x1x128xf32>,
    return
  }
  func.func @transform_0(%arg0: i32) -> (i32, i32, i32) {
    %c0_i32 = arith.constant 0 : i32
    %c0_i32_0 = arith.constant 0 : i32
    %c0_i32_1 = arith.constant 0 : i32
    return %c0_i32, %arg0, %c0_i32_0 : i32, i32, i32
  }
  func.func @transform_1(%arg0: i32) -> (i32, i32, i32) {
    %c0_i32 = arith.constant 0 : i32
    %c0_i32_0 = arith.constant 0 : i32
    %c0_i32_1 = arith.constant 0 : i32
    return %c0_i32, %arg0, %c0_i32_0 : i32, i32, i32
  }
  func.func @transform_2(%arg0: i32) -> (i32, i32, i32) {
    %c0_i32 = arith.constant 0 : i32
    %c0_i32_0 = arith.constant 0 : i32
    %c0_i32_1 = arith.constant 0 : i32
    return %c0_i32, %arg0, %c0_i32_0 : i32, i32, i32
  }
}

</mosaic_0001>

<llo_original>
// kernel: testnet_forward.1
$region0: #{testnet_forward.1}
  #allocation0 [shape = 'u32[]', space=smem, size = 0x4, offset = 0x4, fixed_abs, tag = 'smem constant byte address 0x4 - core index']
  #allocation1 [shape = 'u32[72,128]{1,0:T(1,128)}', space=vmem, size = 0x9000, scoped, tag = 'internal scratch']
  %s0 = inlined_call_operand.vmem [shape: f32[3,1,128], index: 0, kind: input, shape index: {}]
  %s1 = inlined_call_operand.vmem [shape: f32[4,1,128], index: 1, kind: input, shape index: {}]
  %s2 = inlined_call_operand.vmem [shape: f32[4,1,128], index: 2, kind: output, shape index: {}]
  %s3 = sld [smem:[#allocation0]]
  $region18: #{testnet_forward.1} parent=0
    _
  %s5 = ssub.s32 1, %s3
  %s6 = scalar_select 0, %s5, %s3
  // Predicated region
  $region2: #{testnet_forward.1} parent=0 // pred_check
    _
  $region3: #{testnet_forward.1} parent=0 // pred_check_branch
    %8 = sbr.rel (0) target = $region5
  $region4: #{testnet_forward.1} parent=0 // pred_region
    _
  $region5: #{testnet_forward.1} parent=0 // pred_fallthru
    _
  // Predicated region
  $region6: #{testnet_forward.1} parent=0 // pred_check
    _
  $region7: #{testnet_forward.1} parent=0 // pred_check_branch
    %10 = sbr.rel (0) target = $region9
  $region8: #{testnet_forward.1} parent=0 // pred_region
    _
  $region9: #{testnet_forward.1} parent=0 // pred_fallthru
    _
  %v11 = vld [vmem:[%s0] sm:$0x1]
  %v12 = vld [vmem:[%s0 + $0x1] sm:$0x1]
  %v13 = vld [vmem:[%s0 + $0x2] sm:$0x1]
  %v14 = vld [vmem:[%s1] sm:$0x1]
  %v15 = vld [vmem:[%s1 + $0x1] sm:$0x1]
  %v16 = vld [vmem:[%s1 + $0x2] sm:$0x1]
  %v17 = vld [vmem:[%s1 + $0x3] sm:$0x1]
  %v18 = vmul.f32 %v11, %v11
  %v19 = vmul.f32 %v12, %v12
  %v20 = vadd.f32 %v18, %v19
  %v21 = vmul.f32 %v13, %v13
  %v22 = vadd.f32 %v20, %v21
  %vm23 = vcmp.lt.f32.partialorder %v22, 1e-12
  %v24 = vmax.f32 %v22, 1e-12
  %v25 = vrsqrt.pop %v24
  %v26 = vmul.f32 %v25, %v24
  %v27 = vmul.f32 %v26, %v25
  %v28 = vmul.f32 0.5, %v27
  %v29 = vsub.f32 1.5, %v28
  %v30 = vmul.f32 %v25, %v29
  %vm31 = vweird.f32 %v24
  %vm32 = vweird.f32 %v25
  %vm33 = vmor %vm31, %vm32
  %v34 = vsel %vm33, %v25, %v30
  %v35 = vmul.f32 %v22, 0.5
  %v36 = vmul.f32 %v35, %v34
  %v37 = vrcp.pop 48.0
  %v38 = vmul.f32 48.0, %v37
  %v39 = vsub.f32 1.0, %v38
  %v40 = vmul.f32 %v37, %v39
  %v41 = vadd.f32 %v37, %v40
  %vm42 = vweird.f32 %v37
  %v43 = vsel %vm42, %v37, %v41
  %v44 = vmul.f32 %v22, %v43
  %v45 = vsub.f32 0.5, %v44
  %v46 = vand.u32 2147483647, %v36
  %vm47 = vcmp.le.f32.partialorder %v46, 0.7853982
  %vm48 = vcmp.lt.s32.totalorder %v36, 0
  %v49 = vand.u32 %v36, 2139095040
  %v50 = vshrl.u32 %v49, 23
  %v51 = vsub.s32 %v50, 127
  %v52 = vand.u32 2147483647, %v36
  %v53 = vand.u32 %v52, 8388607
  %v54 = vor.u32 %v53, 8388608
  %v55 = vsub.s32 0, %v54
  %v56 = vadd.s32 %v51, 1
  %vm57 = vcmp.gt.s32.totalorder %v56, 0
  %v58 = vsel %vm57, %v56, 0
  %v59 = vshrl.u32 %v58, 5
  %v60 = vand.u32 %v58, 31
  %v61 = vsub.s32 32, %v60
  %v62 = vshrl.u32 683565275, %v61
  %v63 = vshll.u32 683565275, %v60
  %v64 = vshrl.u32 2475754826, %v61
  %v65 = vor.u32 %v63, %v64
  %v66 = vshll.u32 2475754826, %v60
  %v67 = vshrl.u32 2131351028, %v61
  %v68 = vor.u32 %v66, %v67
  %v69 = vshll.u32 2131351028, %v60
  %v70 = vshrl.u32 2102212464, %v61
  %v71 = vor.u32 %v69, %v70
  %v72 = vshll.u32 2102212464, %v60
  %v73 = vshrl.u32 920167782, %v61
  %v74 = vor.u32 %v72, %v73
  %v75 = vshll.u32 920167782, %v60
  %v76 = vshrl.u32 1326507024, %v61
  %v77 = vor.u32 %v75, %v76
  %vm78 = vcmp.lt.s32.totalorder %v59, 1
  %vm79 = vcmp.lt.s32.totalorder %v59, 2
  %vm80 = vcmp.lt.s32.totalorder %v59, 3
  %vm81 = vcmp.lt.s32.totalorder %v59, 4
  %v82 = vsel %vm78, %v62, %v65
  %v83 = vsel %vm81, %v71, 2102212464
  %v84 = vsel %vm80, %v68, %v83
  %v85 = vsel %vm79, %v82, %v84
  %v86 = vsel %vm78, %v65, %v68
  %v87 = vsel %vm81, %v74, 920167782
  %v88 = vsel %vm80, %v71, %v87
  %v89 = vsel %vm79, %v86, %v88
  %v90 = vsel %vm78, %v68, %v71
  %v91 = vsel %vm81, %v77, 1326507024
  %v92 = vsel %vm80, %v74, %v91
  %v93 = vsel %vm79, %v90, %v92
  %v94 = vshll.u32 %v54, 8
  %v95 = vand.u32 %v94, 65535
  %v96 = vshrl.u32 %v94, 16
  %v97 = vand.u32 %v93, 65535
  %v98 = vshrl.u32 %v93, 16
  %v99 = vmul.u32 %v95, %v97
  %v100 = vmul.u32 %v95, %v98
  %v101 = vmul.u32 %v96, %v97
  %v102 = vmul.u32 %v96, %v98
  %v103 = vshll.u32 %v100, 16
  %v104 = vshrl.u32 %v100, 16
  %v105 = vshll.u32 %v101, 16
  %v106 = vshrl.u32 %v101, 16
  %vm107 = vc.u32 %v99, %v103
  %v108 = vsel %vm107, 1, 0
  %v109 = vadd.s32 %v99, %v103
  %v110 = vadd.s32 %v102, %v108
  %vm111 = vc.u32 %v109, %v105
  %v112 = vsel %vm111, 1, 0
  %v113 = vadd.s32 %v109, %v105
  %v114 = vadd.s32 %v110, %v112
  %v115 = vadd.s32 %v114, %v104
  %v116 = vadd.s32 %v115, %v106
  %v117 = vand.u32 %v94, 65535
  %v118 = vshrl.u32 %v94, 16
  %v119 = vand.u32 %v89, 65535
  %v120 = vshrl.u32 %v89, 16
  %v121 = vmul.u32 %v117, %v119
  %v122 = vmul.u32 %v117, %v120
  %v123 = vmul.u32 %v118, %v119
  %v124 = vmul.u32 %v118, %v120
  %v125 = vshll.u32 %v122, 16
  %v126 = vshrl.u32 %v122, 16
  %v127 = vshll.u32 %v123, 16
  %v128 = vshrl.u32 %v123, 16
  %vm129 = vc.u32 %v121, %v125
  %v130 = vsel %vm129, 1, 0
  %v131 = vadd.s32 %v121, %v125
  %v132 = vadd.s32 %v124, %v130
  %vm133 = vc.u32 %v131, %v127
  %v134 = vsel %vm133, 1, 0
  %v135 = vadd.s32 %v131, %v127
  %v136 = vadd.s32 %v132, %v134
  %v137 = vadd.s32 %v136, %v126
  %v138 = vadd.s32 %v137, %v128
  %v139 = vmul.u32 %v94, %v85
  %v140 = vadd.s32 %v116, %v135
  %vm141 = vc.u32 %v116, %v135
  %v142 = vadd.s32 %v138, 1
  %v143 = vsel %vm141, %v142, %v138
  %v144 = vadd.s32 %v139, %v143
  %v145 = vadd.s32 %v144, 536870912
  %v146 = vshrl.u32 %v145, 30
  %v147 = vshll.u32 %v146, 30
  %v148 = vsub.s32 %v144, %v147
  %vm149 = vcmp.lt.s32.totalorder %v148, 0
  %v150 = vsub.s32 0, %v148
  %v151 = vsel %vm149, %v150, %v148
  %v152 = vclz %v151
  %v153 = vsub.s32 %v152, 2
  %vm154 = vcmp.gt.s32.totalorder 0, %v153
  %v155 = vsel %vm154, 0, %v153
  %v156 = vsub.s32 32, %v155
  %v157 = vshll.u32 %v148, %v155
  %v158 = vshrl.u32 %v140, %v156
  %v159 = vor.u32 %v157, %v158
  %v160 = vsub.s32 4294967266, %v155
  %v161 = vadd.s32 %v160, 127
  %v162 = vshll.u32 %v161, 23
  %v163 = vor.u32 4788187, %v162
  %v164 = vand.u32 2147483647, %v163
  %v166 = vcvt.s32.f32 %v159
  %v167 = vmul.f32 %v166, %v164
  %v168 = vxor.u32 %v167, 2147483648
  %v169 = vsel %vm48, %v168, %v167
  %v170 = vsub.s32 4, %v146
  %v171 = vsel %vm48, %v170, %v146
  %v172 = vsel %vm47, %v36, %v169
  %v173 = vsel %vm47, 0, %v171
  %v174 = vmul.f32 %v172, %v172
  %v175 = vmul.f32 %v174, -0.001358992
  %v176 = vadd.f32 %v175, 0.041655596
  %v177 = vmul.f32 %v174, %v176
  %v178 = vadd.f32 %v177, -0.4999988
  %v179 = vmul.f32 %v174, %v178
  %v180 = vadd.f32 1.0, %v179
  %v181 = vmul.f32 %v172, %v172
  %v182 = vmul.f32 %v181, -0.00019511016
  %v183 = vadd.f32 %v182, 0.008332121
  %v184 = vmul.f32 %v181, %v183
  %v185 = vadd.f32 %v184, -0.16666654
  %v186 = vmul.f32 %v181, %v185
  %v187 = vadd.f32 %v186, 1.0
  %v188 = vmul.f32 %v187, %v172
  %vm189 = vweird.f32 %v36
  %v190 = vadd.s32 %v173, 3
  %v191 = vand.u32 %v190, 3
  %vm192 = vcmp.lt.s32.totalorder %v191, 2
  %vm193 = vcmp.eq.s32.totalorder %v191, 0
  %v194 = vxor.u32 %v188, 2147483648
  %v195 = vsel %vm193, %v180, %v194
  %vm196 = vcmp.eq.s32.totalorder %v191, 2
  %v197 = vxor.u32 %v180, 2147483648
  %v198 = vsel %vm196, %v197, %v188
  %v199 = vsel %vm192, %v195, %v198
  %v200 = vsel %vm189, nan, %v199
  %v201 = vmul.f32 %v200, %v34
  %v202 = vsel %vm23, %v45, %v201
  %v203 = vrcp.pop 8.0
  %v204 = vmul.f32 8.0, %v203
  %v205 = vsub.f32 1.0, %v204
  %v206 = vmul.f32 %v203, %v205
  %v207 = vadd.f32 %v203, %v206
  %vm208 = vweird.f32 %v203
  %v209 = vsel %vm208, %v203, %v207
  %v210 = vmul.f32 %v22, %v209
  %v211 = vsub.f32 1.0, %v210
  %v212 = vand.u32 2147483647, %v36
  %vm213 = vcmp.le.f32.partialorder %v212, 0.7853982
  %vm214 = vcmp.lt.s32.totalorder %v36, 0
  %v215 = vand.u32 %v36, 2139095040
  %v216 = vshrl.u32 %v215, 23
  %v217 = vsub.s32 %v216, 127
  %v218 = vand.u32 2147483647, %v36
  %v219 = vand.u32 %v218, 8388607
  %v220 = vor.u32 %v219, 8388608
  %v221 = vsub.s32 0, %v220
  %v222 = vadd.s32 %v217, 1
  %vm223 = vcmp.gt.s32.totalorder %v222, 0
  %v224 = vsel %vm223, %v222, 0
  %v225 = vshrl.u32 %v224, 5
  %v226 = vand.u32 %v224, 31
  %v227 = vsub.s32 32, %v226
  %v228 = vshrl.u32 683565275, %v227
  %v229 = vshll.u32 683565275, %v226
  %v230 = vshrl.u32 2475754826, %v227
  %v231 = vor.u32 %v229, %v230
  %v232 = vshll.u32 2475754826, %v226
  %v233 = vshrl.u32 2131351028, %v227
  %v234 = vor.u32 %v232, %v233
  %v235 = vshll.u32 2131351028, %v226
  %v236 = vshrl.u32 2102212464, %v227
  %v237 = vor.u32 %v235, %v236
  %v238 = vshll.u32 2102212464, %v226
  %v239 = vshrl.u32 920167782, %v227
  %v240 = vor.u32 %v238, %v239
  %v241 = vshll.u32 920167782, %v226
  %v242 = vshrl.u32 1326507024, %v227
  %v243 = vor.u32 %v241, %v242
  %vm244 = vcmp.lt.s32.totalorder %v225, 1
  %vm245 = vcmp.lt.s32.totalorder %v225, 2
  %vm246 = vcmp.lt.s32.totalorder %v225, 3
  %vm247 = vcmp.lt.s32.totalorder %v225, 4
  %v248 = vsel %vm244, %v228, %v231
  %v249 = vsel %vm247, %v237, 2102212464
  %v250 = vsel %vm246, %v234, %v249
  %v251 = vsel %vm245, %v248, %v250
  %v252 = vsel %vm244, %v231, %v234
  %v253 = vsel %vm247, %v240, 920167782
  %v254 = vsel %vm246, %v237, %v253
  %v255 = vsel %vm245, %v252, %v254
  %v256 = vsel %vm244, %v234, %v237
  %v257 = vsel %vm247, %v243, 1326507024
  %v258 = vsel %vm246, %v240, %v257
  %v259 = vsel %vm245, %v256, %v258
  %v260 = vshll.u32 %v220, 8
  %v261 = vand.u32 %v260, 65535
  %v262 = vshrl.u32 %v260, 16
  %v263 = vand.u32 %v259, 65535
  %v264 = vshrl.u32 %v259, 16
  %v265 = vmul.u32 %v261, %v263
  %v266 = vmul.u32 %v261, %v264
  %v267 = vmul.u32 %v262, %v263
  %v268 = vmul.u32 %v262, %v264
  %v269 = vshll.u32 %v266, 16
  %v270 = vshrl.u32 %v266, 16
  %v271 = vshll.u32 %v267, 16
  %v272 = vshrl.u32 %v267, 16
  %vm273 = vc.u32 %v265, %v269
  %v274 = vsel %vm273, 1, 0
  %v275 = vadd.s32 %v265, %v269
  %v276 = vadd.s32 %v268, %v274
  %vm277 = vc.u32 %v275, %v271
  %v278 = vsel %vm277, 1, 0
  %v279 = vadd.s32 %v275, %v271
  %v280 = vadd.s32 %v276, %v278
  %v281 = vadd.s32 %v280, %v270
  %v282 = vadd.s32 %v281, %v272
  %v283 = vand.u32 %v260, 65535
  %v284 = vshrl.u32 %v260, 16
  %v285 = vand.u32 %v255, 65535
  %v286 = vshrl.u32 %v255, 16
  %v287 = vmul.u32 %v283, %v285
  %v288 = vmul.u32 %v283, %v286
  %v289 = vmul.u32 %v284, %v285
  %v290 = vmul.u32 %v284, %v286
  %v291 = vshll.u32 %v288, 16
  %v292 = vshrl.u32 %v288, 16
  %v293 = vshll.u32 %v289, 16
  %v294 = vshrl.u32 %v289, 16
  %vm295 = vc.u32 %v287, %v291
  %v296 = vsel %vm295, 1, 0
  %v297 = vadd.s32 %v287, %v291
  %v298 = vadd.s32 %v290, %v296
  %vm299 = vc.u32 %v297, %v293
  %v300 = vsel %vm299, 1, 0
  %v301 = vadd.s32 %v297, %v293
  %v302 = vadd.s32 %v298, %v300
  %v303 = vadd.s32 %v302, %v292
  %v304 = vadd.s32 %v303, %v294
  %v305 = vmul.u32 %v260, %v251
  %v306 = vadd.s32 %v282, %v301
  %vm307 = vc.u32 %v282, %v301
  %v308 = vadd.s32 %v304, 1
  %v309 = vsel %vm307, %v308, %v304
  %v310 = vadd.s32 %v305, %v309
  %v311 = vadd.s32 %v310, 536870912
  %v312 = vshrl.u32 %v311, 30
  %v313 = vshll.u32 %v312, 30
  %v314 = vsub.s32 %v310, %v313
  %vm315 = vcmp.lt.s32.totalorder %v314, 0
  %v316 = vsub.s32 0, %v314
  %v317 = vsel %vm315, %v316, %v314
  %v318 = vclz %v317
  %v319 = vsub.s32 %v318, 2
  %vm320 = vcmp.gt.s32.totalorder 0, %v319
  %v321 = vsel %vm320, 0, %v319
  %v322 = vsub.s32 32, %v321
  %v323 = vshll.u32 %v314, %v321
  %v324 = vshrl.u32 %v306, %v322
  %v325 = vor.u32 %v323, %v324
  %v326 = vsub.s32 4294967266, %v321
  %v327 = vadd.s32 %v326, 127
  %v328 = vshll.u32 %v327, 23
  %v329 = vor.u32 4788187, %v328
  %v330 = vand.u32 2147483647, %v329
  %v332 = vcvt.s32.f32 %v325
  %v333 = vmul.f32 %v332, %v330
  %v334 = vxor.u32 %v333, 2147483648
  %v335 = vsel %vm214, %v334, %v333
  %v336 = vsub.s32 4, %v312
  %v337 = vsel %vm214, %v336, %v312
  %v338 = vsel %vm213, %v36, %v335
  %v339 = vsel %vm213, 0, %v337
  %v340 = vmul.f32 %v338, %v338
  %v341 = vmul.f32 %v340, -0.001358992
  %v342 = vadd.f32 %v341, 0.041655596
  %v343 = vmul.f32 %v340, %v342
  %v344 = vadd.f32 %v343, -0.4999988
  %v345 = vmul.f32 %v340, %v344
  %v346 = vadd.f32 1.0, %v345
  %v347 = vmul.f32 %v338, %v338
  %v348 = vmul.f32 %v347, -0.00019511016
  %v349 = vadd.f32 %v348, 0.008332121
  %v350 = vmul.f32 %v347, %v349
  %v351 = vadd.f32 %v350, -0.16666654
  %v352 = vmul.f32 %v347, %v351
  %v353 = vadd.f32 %v352, 1.0
  %v354 = vmul.f32 %v353, %v338
  %vm355 = vweird.f32 %v36
  %v356 = vand.u32 %v339, 3
  %vm357 = vcmp.lt.s32.totalorder %v356, 2
  %vm358 = vcmp.eq.s32.totalorder %v356, 0
  %v359 = vxor.u32 %v354, 2147483648
  %v360 = vsel %vm358, %v346, %v359
  %vm361 = vcmp.eq.s32.totalorder %v356, 2
  %v362 = vxor.u32 %v346, 2147483648
  %v363 = vsel %vm361, %v362, %v354
  %v364 = vsel %vm357, %v360, %v363
  %v365 = vsel %vm355, nan, %v364
  %v366 = vsel %vm23, %v211, %v365
  %v367 = vmul.f32 %v11, %v202
  %v368 = vmul.f32 %v12, %v202
  %v369 = vmul.f32 %v13, %v202
  %v370 = vmul.f32 %v366, %v14
  %v371 = vmul.f32 %v367, %v17
  %v372 = vadd.f32 %v370, %v371
  %v373 = vmul.f32 %v368, %v16
  %v374 = vadd.f32 %v372, %v373
  %v375 = vmul.f32 %v369, %v15
  %v376 = vsub.f32 %v374, %v375
  %377 = vst [vmem:[%s2] sm:$0x1] %v376
  %v378 = vmul.f32 %v366, %v15
  %v379 = vmul.f32 %v367, %v16
  %v380 = vsub.f32 %v378, %v379
  %v381 = vmul.f32 %v368, %v17
  %v382 = vadd.f32 %v380, %v381
  %v383 = vmul.f32 %v369, %v14
  %v384 = vadd.f32 %v382, %v383
  %s385 = scalar_lea.vmem %s2, 1
  %386 = vst [vmem:[%s385] sm:$0x1] %v384
  %v387 = vmul.f32 %v366, %v16
  %v388 = vmul.f32 %v367, %v15
  %v389 = vadd.f32 %v387, %v388
  %v390 = vmul.f32 %v368, %v14
  %v391 = vsub.f32 %v389, %v390
  %v392 = vmul.f32 %v369, %v17
  %v393 = vadd.f32 %v391, %v392
  %s394 = scalar_lea.vmem %s2, 2
  %395 = vst [vmem:[%s394] sm:$0x1] %v393
  %v396 = vmul.f32 %v366, %v17
  %v397 = vmul.f32 %v367, %v14
  %v398 = vsub.f32 %v396, %v397
  %v399 = vmul.f32 %v368, %v15
  %v400 = vsub.f32 %v398, %v399
  %v401 = vmul.f32 %v369, %v16
  %v402 = vsub.f32 %v400, %v401
  %s403 = scalar_lea.vmem %s2, 3
  %404 = vst [vmem:[%s403] sm:$0x1] %v402
  // Predicated region
  $region10: #{testnet_forward.1} parent=0 // pred_check
    _
  $region11: #{testnet_forward.1} parent=0 // pred_check_branch
    %406 = sbr.rel (0) target = $region13
  $region12: #{testnet_forward.1} parent=0 // pred_region
    _
  $region13: #{testnet_forward.1} parent=0 // pred_fallthru
    _
  // Predicated region
  $region14: #{testnet_forward.1} parent=0 // pred_check
    _
  $region15: #{testnet_forward.1} parent=0 // pred_check_branch
    %408 = sbr.rel (0) target = $region17
  $region16: #{testnet_forward.1} parent=0 // pred_region
    _
  $region17: #{testnet_forward.1} parent=0 // pred_fallthru
    _

</llo_original>
